<compile_context>
chip_gen: v7x
topology: tpu7x:2x2x1
jax: 0.10.0
libtpu: 0.0.40
codegen_flags: <defaults>
</compile_context>

<pallas_src>
import functools

import jax
import jax.numpy as jnp
from jax import lax
from jax.experimental import pallas as pl
from jax.experimental.pallas import tpu as pltpu


def _flash_diag_masked_kernel(q_ref, k_ref, v_ref,        # (Bt,Tq,D)/(Bt,Tk,D)/(Bt,Tk,Dv)
                              o_ref,                       # (Bt,Tq,Dv) f32 (accumulator)
                              m_scr, l_scr,                # (Bt,Tq,1) f32
                              *, tile_q, tile_k, exp_dtype, approx_recip):
    qi = pl.program_id(1)
    ki = pl.program_id(2)
    nk = pl.num_programs(2)

    # ---- init per (batch-block, q-tile): o_ref doubles as the f32 accumulator
    # (its block index is constant along the kv axis, so it stays VMEM-resident).
    @pl.when(ki == 0)
    def _init():
        m_scr[...] = jnp.full_like(m_scr, -jnp.inf)
        l_scr[...] = jnp.zeros_like(l_scr)
        o_ref[...] = jnp.zeros_like(o_ref)

    # ---- scores (1/temperature already folded into Q by the wrapper).
    s = jnp.einsum("bqd,bkd->bqk", q_ref[...], k_ref[...],
                   preferred_element_type=jnp.float32)       # (Bt,Tq,Tk) f32

    # ---- diagonal (eye) mask, only on tiles intersecting the global diagonal.
    q_start = qi * tile_q
    k_start = ki * tile_k
    has_diag = jnp.logical_and(q_start < k_start + tile_k,
                               k_start < q_start + tile_q)

    def _apply_mask(sv):
        rows = q_start + lax.broadcasted_iota(jnp.int32, (tile_q, tile_k), 0)
        cols = k_start + lax.broadcasted_iota(jnp.int32, (tile_q, tile_k), 1)
        return jnp.where((rows == cols)[None], jnp.finfo(jnp.float32).min, sv)

    s = lax.cond(has_diag, _apply_mask, lambda sv: sv, s)

    # ---- online softmax update (statistics kept in f32).
    m_prev = m_scr[...]
    m_new = jnp.maximum(m_prev, jnp.max(s, axis=-1, keepdims=True))
    alpha = jnp.exp(m_prev - m_new)
    if exp_dtype == jnp.float32:
        p = jnp.exp(s - m_new)                               # exact f32 path
        row_sum = jnp.sum(p, axis=-1, keepdims=True)
    else:
        # bf16 exp: higher EUP throughput on v6e/v7x, no extra full-tile cast
        # before the MXU; row-sum still accumulated in f32.
        p = jnp.exp((s - m_new).astype(exp_dtype))
        row_sum = jnp.sum(p, axis=-1, keepdims=True, dtype=jnp.float32)
    l_scr[...] = alpha * l_scr[...] + row_sum
    o_ref[...] = alpha * o_ref[...] + jnp.einsum(
        "bqk,bkd->bqd", p, v_ref[...], preferred_element_type=jnp.float32)
    m_scr[...] = m_new

    # ---- finalize: normalize once per q tile.
    @pl.when(ki == nk - 1)
    def _finalize():
        if approx_recip:
            o_ref[...] = o_ref[...] * pl.reciprocal(l_scr[...], approx=True)
        else:
            o_ref[...] = o_ref[...] / l_scr[...]             # exact for f32 checks


def locality_attention(q, k, v, wq, bq, wk, bk, wv, bv, temperature,
                       *, block_q=256, block_k=256, block_b=None,
                       mxu_dtype=jnp.bfloat16):
    B, S, A = q.shape
    assert k.shape == (B, S, A) and v.shape == (B, S, A), \
        "eye-mask / Q @ K^T semantics require matching q/k/v shapes"
    Dq, Dk, Dv = wq.shape[1], wk.shape[1], wv.shape[1]
    assert wq.shape[0] == A and wk.shape[0] == A and wv.shape[0] == A
    assert Dq == Dk, "query_dim must equal key_dim for Q @ K^T"
    mxu_dtype = jnp.dtype(mxu_dtype)

    # ---- tile selection ------------------------------------------------------
    Tq = min(block_q, S)
    Tk = min(block_k, S)
    assert S % Tq == 0 and S % Tk == 0
    if Tq < S:
        assert Tq % 8 == 0, "sub-sequence q tiles must be sublane-aligned"
    if Tk < S:
        assert Tk % 8 == 0, "sub-sequence kv tiles must be sublane-aligned"
    n_q, n_k = S // Tq, S // Tk

    if block_b is None:
        block_b = 1
        for cand in (8, 4, 2):
            if B % cand == 0:
                block_b = cand
                break
        # v7x (64 MiB VMEM): keep the per-step (Bt,Tq,Tk) f32 score/p temporaries small.
        while block_b > 1 and block_b * Tq * Tk * 4 > 8 * 2**20:
            block_b //= 2
        # keep >= 2 steps on the parallel grid axes for megacore / dual-TC sharding.
        while block_b > 1 and (B // block_b) * n_q < 2:
            block_b //= 2
    Bt = block_b
    assert B % Bt == 0
    n_b = B // Bt

    # ---- projections: tiny (S,A)x(A,D) matmuls done once by XLA; 1/temperature
    # folded into Q; kernel inputs cast to mxu_dtype (bf16 -> ~4x fewer k/v bytes).
    prec = lax.Precision.HIGHEST
    inv_t = 1.0 / jnp.asarray(temperature, jnp.float32)
    Q = (jnp.einsum("bsa,ad->bsd", q, wq, precision=prec) + bq) * inv_t
    K = jnp.einsum("bsa,ad->bsd", k, wk, precision=prec) + bk
    V = jnp.einsum("bsa,ad->bsd", v, wv, precision=prec) + bv
    Q = Q.astype(mxu_dtype)
    K = K.astype(mxu_dtype)
    V = V.astype(mxu_dtype)

    # ---- VMEM budget: double-buffered input tiles + resident output block +
    # m/l scratch + score/p temporaries, with headroom; capped for v7x (64 MiB).
    isz = mxu_dtype.itemsize
    est = (2 * Bt * (Tq * Dq + Tk * Dq + Tk * Dv) * isz
           + 2 * Bt * Tq * Dv * 4
           + 4 * Bt * Tq * 4
           + 3 * Bt * Tq * Tk * 4)
    vmem_limit = int(min(max(2 * est, 32 * 2**20), 64 * 2**20))

    kernel = functools.partial(
        _flash_diag_masked_kernel,
        tile_q=Tq, tile_k=Tk, exp_dtype=mxu_dtype,
        approx_recip=(mxu_dtype != jnp.float32))

    return pl.pallas_call(
        kernel,
        out_shape=jax.ShapeDtypeStruct((B, S, Dv), jnp.float32),
        grid=(n_b, n_q, n_k),
        in_specs=[
            pl.BlockSpec((Bt, Tq, Dq), lambda b, qi, ki: (b, qi, 0)),   # Q (scaled)
            pl.BlockSpec((Bt, Tk, Dq), lambda b, qi, ki: (b, ki, 0)),   # K
            pl.BlockSpec((Bt, Tk, Dv), lambda b, qi, ki: (b, ki, 0)),   # V
        ],
        out_specs=pl.BlockSpec((Bt, Tq, Dv), lambda b, qi, ki: (b, qi, 0)),
        scratch_shapes=[
            pltpu.VMEM((Bt, Tq, 1), jnp.float32),   # running max m
            pltpu.VMEM((Bt, Tq, 1), jnp.float32),   # running sum l
        ],
        compiler_params=pltpu.CompilerParams(
            dimension_semantics=("parallel", "parallel", "arbitrary"),
            vmem_limit_bytes=vmem_limit),
    )(Q, K, V)


def locality_attention_ref(q, k, v, wq, bq, wk, bk, wv, bv, temperature):
    prec = lax.Precision.HIGHEST
    Q = jnp.einsum("bsa,ad->bsd", q, wq, precision=prec) + bq
    K = jnp.einsum("bsa,ad->bsd", k, wk, precision=prec) + bk
    V = jnp.einsum("bsa,ad->bsd", v, wv, precision=prec) + bv
    x = jnp.einsum("bqd,bkd->bqk", Q, K, precision=prec) / temperature
    S = x.shape[-1]
    x = jnp.where(jnp.eye(S, dtype=bool)[None], jnp.finfo(x.dtype).min, x)
    p = jax.nn.softmax(x, axis=-1)
    return jnp.einsum("bqk,bkd->bqd", p, V, precision=prec)


if __name__ == "__main__":
    def make_inputs(B, S, A, Dq, Dk, Dv, seed=0):
        keys = jax.random.split(jax.random.PRNGKey(seed), 9)
        q = jax.random.normal(keys[0], (B, S, A), jnp.float32)
        k = jax.random.normal(keys[1], (B, S, A), jnp.float32)
        v = jax.random.normal(keys[2], (B, S, A), jnp.float32)
        # nn.Linear: y = x @ W^T + b; W^T is stored directly here.
        wq = jax.random.normal(keys[3], (A, Dq), jnp.float32) * 0.1
        bq = jax.random.normal(keys[4], (Dq,), jnp.float32) * 0.1
        wk = jax.random.normal(keys[5], (A, Dk), jnp.float32) * 0.1
        bk = jax.random.normal(keys[6], (Dk,), jnp.float32) * 0.1
        wv = jax.random.normal(keys[7], (A, Dv), jnp.float32) * 0.1
        bv = jax.random.normal(keys[8], (Dv,), jnp.float32) * 0.1
        temperature = 0.5 * Dk ** 0.5   # nn.Parameter init value
        return (q, k, v, wq, bq, wk, bk, wv, bv, temperature)

    def check(out, ref, atol, rtol, name):
        assert out.shape == ref.shape, f"{name}: shape {out.shape} vs {ref.shape}"
        err = float(jnp.max(jnp.abs(out - ref)))
        assert jnp.allclose(out, ref, atol=atol, rtol=rtol), \
            f"{name}: max abs err {err}"

    A, Dq, Dk, Dv = 32, 16, 16, 16

    # 1) module-consistent toy shape (single tile), exact f32 path.
    args = make_inputs(2, 8, A, Dq, Dk, Dv, seed=0)
    ref = locality_attention_ref(*args)
    out = jax.block_until_ready(locality_attention(*args, mxu_dtype=jnp.float32))
    check(out, ref, 1e-2, 1e-2, "f32 single-tile")

    # 2) multi-tile path (online softmax across kv, diag + off-diag tiles), f32.
    args = make_inputs(2, 256, A, Dq, Dk, Dv, seed=1)
    ref = locality_attention_ref(*args)
    out = jax.block_until_ready(
        locality_attention(*args, block_q=64, block_k=64, mxu_dtype=jnp.float32))
    check(out, ref, 1e-2, 1e-2, "f32 multi-tile")

    # 3) multi-tile bf16 MXU/EUP path (performance configuration).
    out = jax.block_until_ready(
        locality_attention(*args, block_q=128, block_k=128,
                           mxu_dtype=jnp.bfloat16))
    check(out, ref, 3e-2, 3e-2, "bf16 multi-tile")

    # 4) default (large-tile) bf16 configuration.
    out = jax.block_until_ready(locality_attention(*args))
    check(out, ref, 3e-2, 3e-2, "bf16 default tiles")

    print("KERNEL_OK")
</pallas_src>

<mosaic_0001>
module attributes {stable_mosaic.version = 11 : i64} {
  func.func @_flash_diag_masked_kernel(%arg0: i32, %arg1: i32, %arg2: i32, %arg3: memref<1x8x16xf32, #tpu.memory_space<vmem>>, %arg4: memref<1x8x16xf32, #tpu.memory_space<vmem>>, %arg5: memref<1x8x16xf32, #tpu.memory_space<vmem>>, %arg6: memref<1x8x16xf32, #tpu.memory_space<vmem>>, %arg7: memref<1x8x1xf32, #tpu.memory_space<vmem>>, %arg8: memref<1x8x1xf32, #tpu.memory_space<vmem>>) attributes {dimension_semantics = [#tpu.dimension_semantics<parallel>, #tpu.dimension_semantics<parallel>, #tpu.dimension_semantics<arbitrary>], iteration_bounds = array<i64: 2, 1, 1>, scalar_prefetch = 0 : i64, scratch_operands = 2 : i64, tpu.core_type = #tpu.core_type<tc>, window_params = [{transform_indices = @transform_0, window_bounds = array<i64: 1, 8, 16>}, {transform_indices = @transform_1, window_bounds = array<i64: 1, 8, 16>}, {transform_indices = @transform_2, window_bounds = array<i64: 1, 8, 16>}, {transform_indices = @transform_3, window_bounds = array<i64: 1, 8, 16>}]} {
    %c0_i32 = arith.constant 0 : i32
    %0 = arith.cmpi eq, %arg2, %c0_i32 : i32
    %1 = arith.extui %0 : i1 to i32
    %c0_i32_0 = arith.constant 0 : i32
    %2 = arith.cmpi ne, %1, %c0_i32_0 : i32
    scf.if %2 {
      %cst_36 = arith.constant 0xFF800000 : f32
      %42 = vector.broadcast %cst_36 : f32 to vector<1x8x1xf32>
      %c0_37 = arith.constant 0 : index
      %c0_38 = arith.constant 0 : index
      %c0_39 = arith.constant 0 : index
      %43 = vector.load %arg7[%c0_37, %c0_38, %c0_39] : memref<1x8x1xf32, #tpu.memory_space<vmem>>, vector<1x8x1xf32>
      tpu.vector_store %arg7[%c0_37, %c0_38, %c0_39], %42 {strides = array<i32>} : memref<1x8x1xf32, #tpu.memory_space<vmem>>, vector<1x8x1xf32>,
      %cst_40 = arith.constant 0.000000e+00 : f32
      %44 = vector.broadcast %cst_40 : f32 to vector<1x8x1xf32>
      %c0_41 = arith.constant 0 : index
      %c0_42 = arith.constant 0 : index
      %c0_43 = arith.constant 0 : index
      %45 = vector.load %arg8[%c0_41, %c0_42, %c0_43] : memref<1x8x1xf32, #tpu.memory_space<vmem>>, vector<1x8x1xf32>
      tpu.vector_store %arg8[%c0_41, %c0_42, %c0_43], %44 {strides = array<i32>} : memref<1x8x1xf32, #tpu.memory_space<vmem>>, vector<1x8x1xf32>,
      %cst_44 = arith.constant 0.000000e+00 : f32
      %46 = vector.broadcast %cst_44 : f32 to vector<1x8x16xf32>
      %c0_45 = arith.constant 0 : index
      %c0_46 = arith.constant 0 : index
      %c0_47 = arith.constant 0 : index
      %47 = vector.load %arg6[%c0_45, %c0_46, %c0_47] : memref<1x8x16xf32, #tpu.memory_space<vmem>>, vector<1x8x16xf32>
      tpu.vector_store %arg6[%c0_45, %c0_46, %c0_47], %46 {strides = array<i32>} : memref<1x8x16xf32, #tpu.memory_space<vmem>>, vector<1x8x16xf32>,
    } else {
    }
    %c0 = arith.constant 0 : index
    %c0_1 = arith.constant 0 : index
    %c0_2 = arith.constant 0 : index
    %3 = vector.load %arg3[%c0, %c0_1, %c0_2] : memref<1x8x16xf32, #tpu.memory_space<vmem>>, vector<1x8x16xf32>
    %c0_3 = arith.constant 0 : index
    %c0_4 = arith.constant 0 : index
    %c0_5 = arith.constant 0 : index
    %4 = vector.load %arg4[%c0_3, %c0_4, %c0_5] : memref<1x8x16xf32, #tpu.memory_space<vmem>>, vector<1x8x16xf32>
    "tpu.trace_start"() <{level = 10 : i32, message = "bqd,bkd->bqk"}> : () -> ()
    %cst = arith.constant dense<0.000000e+00> : vector<1x8x8xf32>
    %5 = tpu.matmul %3, %4, %cst {dimension_numbers = #tpu.dot_dimension_numbers<[2], [2], [1], [1], [0, 0, 0, 1, 1, 1], [0], [0]>} : vector<1x8x16xf32>, vector<1x8x16xf32>, vector<1x8x8xf32> -> vector<1x8x8xf32>
    "tpu.trace_stop"() : () -> ()
    %c8_i32 = arith.constant 8 : i32
    %6 = arith.muli %arg1, %c8_i32 : i32
    %c8_i32_6 = arith.constant 8 : i32
    %7 = arith.muli %arg2, %c8_i32_6 : i32
    %c8_i32_7 = arith.constant 8 : i32
    %8 = arith.addi %7, %c8_i32_7 : i32
    %9 = arith.cmpi slt, %6, %8 : i32
    %c8_i32_8 = arith.constant 8 : i32
    %10 = arith.addi %6, %c8_i32_8 : i32
    %11 = arith.cmpi slt, %7, %10 : i32
    %12 = arith.andi %9, %11 : i1
    %13 = arith.extui %12 : i1 to i32
    %c0_i32_9 = arith.constant 0 : i32
    %14 = arith.cmpi ne, %13, %c0_i32_9 : i32
    %15 = scf.if %14 -> (vector<1x8x8xf32>) {
      %42 = tpu.iota {dimensions = array<i32: 0>} : vector<8x8xi32>
      %43 = vector.broadcast %6 : i32 to vector<8x8xi32>
      %44 = arith.addi %43, %42 : vector<8x8xi32>
      %45 = tpu.iota {dimensions = array<i32: 1>} : vector<8x8xi32>
      %46 = vector.broadcast %7 : i32 to vector<8x8xi32>
      %47 = arith.addi %46, %45 : vector<8x8xi32>
      %48 = arith.cmpi eq, %44, %47 : vector<8x8xi32>
      %49 = vector.shape_cast %48 : vector<8x8xi1> to vector<1x8x8xi1>
      %cst_36 = arith.constant -3.40282347E+38 : f32
      %50 = vector.broadcast %cst_36 : f32 to vector<1x8x8xf32>
      %51 = arith.select %49, %50, %5 : vector<1x8x8xi1>, vector<1x8x8xf32>
      scf.yield %51 : vector<1x8x8xf32>
    } else {
      scf.yield %5 : vector<1x8x8xf32>
    }
    %c0_10 = arith.constant 0 : index
    %c0_11 = arith.constant 0 : index
    %c0_12 = arith.constant 0 : index
    %16 = vector.load %arg7[%c0_10, %c0_11, %c0_12] : memref<1x8x1xf32, #tpu.memory_space<vmem>>, vector<1x8x1xf32>
    %cst_13 = arith.constant dense<0xFF800000> : vector<1x8xf32>
    %17 = vector.multi_reduction <maximumf>, %15, %cst_13 [2] : vector<1x8x8xf32> to vector<1x8xf32>
    %18 = vector.shape_cast %17 : vector<1x8xf32> to vector<1x8x1xf32>
    %19 = arith.maximumf %16, %18 : vector<1x8x1xf32>
    %20 = arith.subf %16, %19 : vector<1x8x1xf32>
    %21 = math.exp %20 : vector<1x8x1xf32>
    %22 = vector.broadcast %19 : vector<1x8x1xf32> to vector<1x8x8xf32>
    %23 = arith.subf %15, %22 : vector<1x8x8xf32>
    %24 = math.exp %23 : vector<1x8x8xf32>
    %cst_14 = arith.constant dense<0.000000e+00> : vector<1x8xf32>
    %25 = vector.multi_reduction <add>, %24, %cst_14 [2] : vector<1x8x8xf32> to vector<1x8xf32>
    %26 = vector.shape_cast %25 : vector<1x8xf32> to vector<1x8x1xf32>
    %c0_15 = arith.constant 0 : index
    %c0_16 = arith.constant 0 : index
    %c0_17 = arith.constant 0 : index
    %27 = vector.load %arg8[%c0_15, %c0_16, %c0_17] : memref<1x8x1xf32, #tpu.memory_space<vmem>>, vector<1x8x1xf32>
    %28 = arith.mulf %21, %27 : vector<1x8x1xf32>
    %29 = arith.addf %28, %26 : vector<1x8x1xf32>
    %c0_18 = arith.constant 0 : index
    %c0_19 = arith.constant 0 : index
    %c0_20 = arith.constant 0 : index
    %30 = vector.load %arg8[%c0_18, %c0_19, %c0_20] : memref<1x8x1xf32, #tpu.memory_space<vmem>>, vector<1x8x1xf32>
    tpu.vector_store %arg8[%c0_18, %c0_19, %c0_20], %29 {strides = array<i32>} : memref<1x8x1xf32, #tpu.memory_space<vmem>>, vector<1x8x1xf32>,
    %c0_21 = arith.constant 0 : index
    %c0_22 = arith.constant 0 : index
    %c0_23 = arith.constant 0 : index
    %31 = vector.load %arg6[%c0_21, %c0_22, %c0_23] : memref<1x8x16xf32, #tpu.memory_space<vmem>>, vector<1x8x16xf32>
    %32 = vector.broadcast %21 : vector<1x8x1xf32> to vector<1x8x16xf32>
    %33 = arith.mulf %32, %31 : vector<1x8x16xf32>
    %c0_24 = arith.constant 0 : index
    %c0_25 = arith.constant 0 : index
    %c0_26 = arith.constant 0 : index
    %34 = vector.load %arg5[%c0_24, %c0_25, %c0_26] : memref<1x8x16xf32, #tpu.memory_space<vmem>>, vector<1x8x16xf32>
    "tpu.trace_start"() <{level = 10 : i32, message = "bqk,bkd->bqd"}> : () -> ()
    %cst_27 = arith.constant dense<0.000000e+00> : vector<1x8x16xf32>
    %35 = tpu.matmul %24, %34, %cst_27 {dimension_numbers = #tpu.dot_dimension_numbers<[2], [1], [1], [2], [0, 0, 0, 1, 1, 2], [0], [0]>} : vector<1x8x8xf32>, vector<1x8x16xf32>, vector<1x8x16xf32> -> vector<1x8x16xf32>
    "tpu.trace_stop"() : () -> ()
    %36 = arith.addf %33, %35 : vector<1x8x16xf32>
    %c0_28 = arith.constant 0 : index
    %c0_29 = arith.constant 0 : index
    %c0_30 = arith.constant 0 : index
    %37 = vector.load %arg6[%c0_28, %c0_29, %c0_30] : memref<1x8x16xf32, #tpu.memory_space<vmem>>, vector<1x8x16xf32>
    tpu.vector_store %arg6[%c0_28, %c0_29, %c0_30], %36 {strides = array<i32>} : memref<1x8x16xf32, #tpu.memory_space<vmem>>, vector<1x8x16xf32>,
    %c0_31 = arith.constant 0 : index
    %c0_32 = arith.constant 0 : index
    %c0_33 = arith.constant 0 : index
    %38 = vector.load %arg7[%c0_31, %c0_32, %c0_33] : memref<1x8x1xf32, #tpu.memory_space<vmem>>, vector<1x8x1xf32>
    tpu.vector_store %arg7[%c0_31, %c0_32, %c0_33], %19 {strides = array<i32>} : memref<1x8x1xf32, #tpu.memory_space<vmem>>, vector<1x8x1xf32>,
    %c0_i32_34 = arith.constant 0 : i32
    %39 = arith.cmpi eq, %arg2, %c0_i32_34 : i32
    %40 = arith.extui %39 : i1 to i32
    %c0_i32_35 = arith.constant 0 : i32
    %41 = arith.cmpi ne, %40, %c0_i32_35 : i32
    scf.if %41 {
      %c0_36 = arith.constant 0 : index
      %c0_37 = arith.constant 0 : index
      %c0_38 = arith.constant 0 : index
      %42 = vector.load %arg6[%c0_36, %c0_37, %c0_38] : memref<1x8x16xf32, #tpu.memory_space<vmem>>, vector<1x8x16xf32>
      %c0_39 = arith.constant 0 : index
      %c0_40 = arith.constant 0 : index
      %c0_41 = arith.constant 0 : index
      %43 = vector.load %arg8[%c0_39, %c0_40, %c0_41] : memref<1x8x1xf32, #tpu.memory_space<vmem>>, vector<1x8x1xf32>
      %44 = vector.broadcast %43 : vector<1x8x1xf32> to vector<1x8x16xf32>
      %45 = arith.divf %42, %44 : vector<1x8x16xf32>
      %c0_42 = arith.constant 0 : index
      %c0_43 = arith.constant 0 : index
      %c0_44 = arith.constant 0 : index
      %46 = vector.load %arg6[%c0_42, %c0_43, %c0_44] : memref<1x8x16xf32, #tpu.memory_space<vmem>>, vector<1x8x16xf32>
      tpu.vector_store %arg6[%c0_42, %c0_43, %c0_44], %45 {strides = array<i32>} : memref<1x8x16xf32, #tpu.memory_space<vmem>>, vector<1x8x16xf32>,
    } else {
    }
    return
  }
  func.func @transform_0(%arg0: i32, %arg1: i32, %arg2: i32) -> (i32, i32, i32) {
    %c0_i32 = arith.constant 0 : i32
    %c0_i32_0 = arith.constant 0 : i32
    return %arg0, %arg1, %c0_i32 : i32, i32, i32
  }
  func.func @transform_1(%arg0: i32, %arg1: i32, %arg2: i32) -> (i32, i32, i32) {
    %c0_i32 = arith.constant 0 : i32
    %c0_i32_0 = arith.constant 0 : i32
    return %arg0, %arg2, %c0_i32 : i32, i32, i32
  }
  func.func @transform_2(%arg0: i32, %arg1: i32, %arg2: i32) -> (i32, i32, i32) {
    %c0_i32 = arith.constant 0 : i32
    %c0_i32_0 = arith.constant 0 : i32
    return %arg0, %arg2, %c0_i32 : i32, i32, i32
  }
  func.func @transform_3(%arg0: i32, %arg1: i32, %arg2: i32) -> (i32, i32, i32) {
    %c0_i32 = arith.constant 0 : i32
    %c0_i32_0 = arith.constant 0 : i32
    return %arg0, %arg1, %c0_i32 : i32, i32, i32
  }
}

</mosaic_0001>

<llo_original>
// kernel: tpu_custom_call.1
$region0: #{tpu_custom_call.1}
  #allocation0 [shape = 'u32[]', space=smem, size = 0x4, offset = 0x4, fixed_abs, tag = 'smem constant byte address 0x4 - core index']
  #allocation1 [shape = 'u32[144,128]{1,0:T(1,128)}', space=vmem, size = 0x12000, scoped, tag = 'internal scratch']
  #allocation2 [shape = 'f32[1,8,1]{2,1,0:T(8,128)}', space=vmem, size = 0x1000, scoped, tag = 'scratch operand']
  #allocation3 [shape = 'f32[1,8,1]{2,1,0:T(8,128)}', space=vmem, size = 0x1000, scoped, tag = 'scratch operand']
  %s0 = inlined_call_operand.hbm [shape: f32[2,8,16], index: 0, kind: input, shape index: {}]
  %s1 = inlined_call_operand.hbm [shape: f32[2,8,16], index: 1, kind: input, shape index: {}]
  %s2 = inlined_call_operand.hbm [shape: f32[2,8,16], index: 2, kind: input, shape index: {}]
  %s3 = inlined_call_operand.hbm [shape: f32[2,8,16], index: 3, kind: output, shape index: {}]
  %s4 = sld [smem:[#allocation0]]
  $region73: #{tpu_custom_call.1} parent=0
    _
  %s6 = ssub.s32 1, %s4
  %s7 = scalar_select 0, %s6, %s4
  $region1: #{tpu_custom_call.1} parent=0
    #allocation4 [shape = 'u8[8192]{0}', space=vmem, size = 0x2000, scoped, tag = 'input window, operand 0']
    #allocation5 [shape = 's32[2]{0}', space=sflag, size = 0x8, scoped, tag = 'scoped memory for tpu_custom_call.1']
    #allocation6 [shape = 's32[2]{0}', space=sflag, size = 0x8, scoped, tag = 'scoped memory for tpu_custom_call.1']
    #allocation7 [shape = 'u8[8192]{0}', space=vmem, size = 0x2000, scoped, tag = 'input window, operand 1']
    #allocation8 [shape = 's32[2]{0}', space=sflag, size = 0x8, scoped, tag = 'scoped memory for tpu_custom_call.1']
    #allocation9 [shape = 'u8[8192]{0}', space=vmem, size = 0x2000, scoped, tag = 'input window, operand 2']
    #allocation10 [shape = 'u8[8192]{0}', space=vmem, size = 0x2000, scoped, tag = 'output window, operand 0']
    %8 = vsyncpa [#allocation5], 0
    %s9 = scalar_lea.sflag [#allocation5], 1
    %10 = vsyncpa %s9, 0
    %11 = vsyncpa [#allocation8], 0
    %s12 = scalar_lea.sflag [#allocation8], 1
    %13 = vsyncpa %s12, 0
    %14 = vsyncpa [#allocation6], 0
    %s15 = scalar_lea.sflag [#allocation6], 1
    %16 = vsyncpa %s15, 0
    loop: start=0, step=1, limit=4
    $region2: #{tpu_custom_call.1} parent=1 // loop_pre_header
      _
    $region3: #{tpu_custom_call.1} parent=1 // loop_header
      %s18 = sphi 0, %s22
      %p19 = scmp.ge.s32.totalorder %s18, 4
      %s25 = sphi 0, %s44
      %s26 = sphi 0, %s40
      %s27 = sphi 0, %s36
      %s28 = sphi 0, %s25
      %s29 = sphi 0, %s26
      %s30 = sphi 0, %s27
      %s31 = sphi 0, %s28
      %s32 = sphi 0, %s29
      %s33 = sphi 0, %s30
      %s49 = sphi 0, %s51
      %s52 = sphi 0, %s49
      %s53 = sphi 0, %s52
      %s69 = sphi 0, %s53
      %s77 = sphi 0, %s79
      %s80 = sphi 0, %s77
      %s81 = sphi 0, %s80
      %s97 = sphi 0, %s81
      %s105 = sphi 0, %s107
      %s108 = sphi 0, %s105
      %s109 = sphi 0, %s108
      %s125 = sphi 0, %s109
      %s133 = sphi 0, %s135
      %s136 = sphi 0, %s133
      %s137 = sphi 0, %s136
      %s153 = sphi 0, %s137
    $region4: #{tpu_custom_call.1} parent=1 // loop_header_branch
      %21 = sbr.rel (%p19) target = $region8
    $region5: #{tpu_custom_call.1} parent=1 // loop_body
      %s23 = ssub.s32 %s18, 1
      %s24 = ssub.s32 %s18, 2
      %s34 = sadd.s32 1, %s27
      %p35 = scmp.ge.s32.totalorder %s34, 1
      %s36 = scalar_select %p35, 0, %s34
      %s37 = sadd.s32 1, %s26
      %s38 = scalar_select %p35, %s37, %s26
      %p39 = scmp.ge.s32.totalorder %s38, 1
      %s40 = scalar_select %p39, 0, %s38
      %s41 = sadd.s32 1, %s25
      %s42 = scalar_select %p39, %s41, %s25
      %p43 = scmp.ge.s32.totalorder %s42, 2
      %s44 = scalar_select %p43, 0, %s42
      %s45 = ssub.s32 %s25, %s44
      %s46 = ssub.s32 %s26, %s40
      %s47 = sor.u32 %s45, %s46
      %p48 = scmp.eq.s32.totalorder %s47, 0
      %s50 = sadd.s32 %s49, 1
      %s51 = scalar_select %p48, %s49, %s50
      %p54 = pneg %p48
      %p55 = scmp.eq.s32.totalorder %s18, 1
      %p56 = por %p54, %p55
      %p57 = scmp.ne.s32.totalorder %s49, %s52
      %p58 = scmp.eq.s32.totalorder %s18, 0
      %p59 = por %p57, %p58
      %p60 = scmp.ne.s32.totalorder %s49, %s52
      %p61 = scmp.eq.s32.totalorder %s23, 1
      %p62 = por %p60, %p61
      %p63 = scmp.ne.s32.totalorder %s52, %s53
      %p64 = scmp.eq.s32.totalorder %s23, 0
      %p65 = por %p63, %p64
      %p66 = scmp.ne.s32.totalorder %s52, %s53
      %p67 = scmp.eq.s32.totalorder %s24, 1
      %p68 = por %p66, %p67
      %p70 = scmp.ne.s32.totalorder %s53, %s69
      %p71 = scmp.eq.s32.totalorder %s24, 0
      %p72 = por %p70, %p71
      %s73 = ssub.s32 %s25, %s44
      %s74 = ssub.s32 %s27, %s36
      %s75 = sor.u32 %s73, %s74
      %p76 = scmp.eq.s32.totalorder %s75, 0
      %s78 = sadd.s32 %s77, 1
      %s79 = scalar_select %p76, %s77, %s78
      %p82 = pneg %p76
      %p83 = scmp.eq.s32.totalorder %s18, 1
      %p84 = por %p82, %p83
      %p85 = scmp.ne.s32.totalorder %s77, %s80
      %p86 = scmp.eq.s32.totalorder %s18, 0
      %p87 = por %p85, %p86
      %p88 = scmp.ne.s32.totalorder %s77, %s80
      %p89 = scmp.eq.s32.totalorder %s23, 1
      %p90 = por %p88, %p89
      %p91 = scmp.ne.s32.totalorder %s80, %s81
      %p92 = scmp.eq.s32.totalorder %s23, 0
      %p93 = por %p91, %p92
      %p94 = scmp.ne.s32.totalorder %s80, %s81
      %p95 = scmp.eq.s32.totalorder %s24, 1
      %p96 = por %p94, %p95
      %p98 = scmp.ne.s32.totalorder %s81, %s97
      %p99 = scmp.eq.s32.totalorder %s24, 0
      %p100 = por %p98, %p99
      %s101 = ssub.s32 %s25, %s44
      %s102 = ssub.s32 %s27, %s36
      %s103 = sor.u32 %s101, %s102
      %p104 = scmp.eq.s32.totalorder %s103, 0
      %s106 = sadd.s32 %s105, 1
      %s107 = scalar_select %p104, %s105, %s106
      %p110 = pneg %p104
      %p111 = scmp.eq.s32.totalorder %s18, 1
      %p112 = por %p110, %p111
      %p113 = scmp.ne.s32.totalorder %s105, %s108
      %p114 = scmp.eq.s32.totalorder %s18, 0
      %p115 = por %p113, %p114
      %p116 = scmp.ne.s32.totalorder %s105, %s108
      %p117 = scmp.eq.s32.totalorder %s23, 1
      %p118 = por %p116, %p117
      %p119 = scmp.ne.s32.totalorder %s108, %s109
      %p120 = scmp.eq.s32.totalorder %s23, 0
      %p121 = por %p119, %p120
      %p122 = scmp.ne.s32.totalorder %s108, %s109
      %p123 = scmp.eq.s32.totalorder %s24, 1
      %p124 = por %p122, %p123
      %p126 = scmp.ne.s32.totalorder %s109, %s125
      %p127 = scmp.eq.s32.totalorder %s24, 0
      %p128 = por %p126, %p127
      %s129 = ssub.s32 %s25, %s44
      %s130 = ssub.s32 %s26, %s40
      %s131 = sor.u32 %s129, %s130
      %p132 = scmp.eq.s32.totalorder %s131, 0
      %s134 = sadd.s32 %s133, 1
      %s135 = scalar_select %p132, %s133, %s134
      %p138 = pneg %p132
      %p139 = scmp.eq.s32.totalorder %s18, 1
      %p140 = por %p138, %p139
      %p141 = scmp.ne.s32.totalorder %s133, %s136
      %p142 = scmp.eq.s32.totalorder %s18, 0
      %p143 = por %p141, %p142
      %p144 = scmp.ne.s32.totalorder %s133, %s136
      %p145 = scmp.eq.s32.totalorder %s23, 1
      %p146 = por %p144, %p145
      %p147 = scmp.ne.s32.totalorder %s136, %s137
      %p148 = scmp.eq.s32.totalorder %s23, 0
      %p149 = por %p147, %p148
      %p150 = scmp.ne.s32.totalorder %s136, %s137
      %p151 = scmp.eq.s32.totalorder %s24, 1
      %p152 = por %p150, %p151
      %p154 = scmp.ne.s32.totalorder %s137, %s153
      %p155 = scmp.eq.s32.totalorder %s24, 0
      %p156 = por %p154, %p155
      %p157 = scmp.le.s32.totalorder 1, %s18
      %p158 = scmp.lt.s32.totalorder %s18, 3
      %p159 = pnand %p157, %p158
      %p160 = pneg %p159
      // Predicated region
      $region9: #{tpu_custom_call.1} parent=5 // pred_check
        _
      $region10: #{tpu_custom_call.1} parent=5 // pred_check_branch
        %162 = sbr.rel (%p159) target = $region12
      $region11: #{tpu_custom_call.1} parent=5 // pred_region
        %s163 = ssub.s32 %s18, 1
      $region12: #{tpu_custom_call.1} parent=5 // pred_fallthru
        _
      %p164 = scmp.lt.s32.totalorder %s18, 2
      // Predicated region
      $region13: #{tpu_custom_call.1} parent=5 // pred_check
        %p165 = pneg %p164
      $region14: #{tpu_custom_call.1} parent=5 // pred_check_branch
        %167 = sbr.rel (%p165) target = $region16
      $region15: #{tpu_custom_call.1} parent=5 // pred_region
        // Predicated region
        $region17: #{tpu_custom_call.1} parent=15 // pred_check
          %p168 = pneg %p59
        $region18: #{tpu_custom_call.1} parent=15 // pred_check_branch
          %170 = sbr.rel (%p168) target = $region20
        $region19: #{tpu_custom_call.1} parent=15 // pred_region
          %s171 = sand.u32 %s49, 1
          %s172 = scalar_lea.sflag [#allocation5], %s171
          %s173 = sand.u32 %s49, 1
          %s174 = smul.addr %s173, 8
          %s175 = scalar_lea.vmem [#allocation4], %s174
          %s177 = ssub.s32 128, 128
          %178 = vsyncadd %s172, %s177
          %s179 = sadd.s32 %s26, %s25
          %s180 = smul.addr %s179, 128
          %s181 = scalar_lea.hbm %s0, %s180
          %s183 = sshll.u32 %s175, 4
          %s184 = int_to_ptr.vmem [resolvable:$true] %s183
          %186 = dma.hbm_to_vmem [thread:$0]  %s181, 128, %s184, %s172
        $region20: #{tpu_custom_call.1} parent=15 // pred_fallthru
          _
        // Predicated region
        $region21: #{tpu_custom_call.1} parent=15 // pred_check
          %p187 = pneg %p87
        $region22: #{tpu_custom_call.1} parent=15 // pred_check_branch
          %189 = sbr.rel (%p187) target = $region24
        $region23: #{tpu_custom_call.1} parent=15 // pred_region
          %s190 = sand.u32 %s18, 1
          %s191 = scalar_lea.sflag [#allocation8], %s190
          %s192 = sand.u32 %s77, 1
          %s193 = smul.addr %s192, 8
          %s194 = scalar_lea.vmem [#allocation7], %s193
          %s196 = ssub.s32 128, 128
          %197 = vsyncadd %s191, %s196
          %s198 = sadd.s32 %s27, %s25
          %s199 = smul.addr %s198, 128
          %s200 = scalar_lea.hbm %s1, %s199
          %s202 = sshll.u32 %s194, 4
          %s203 = int_to_ptr.vmem [resolvable:$true] %s202
          %205 = dma.hbm_to_vmem [thread:$0]  %s200, 128, %s203, %s191
        $region24: #{tpu_custom_call.1} parent=15 // pred_fallthru
          _
        // Predicated region
        $region25: #{tpu_custom_call.1} parent=15 // pred_check
          %p206 = pneg %p115
        $region26: #{tpu_custom_call.1} parent=15 // pred_check_branch
          %208 = sbr.rel (%p206) target = $region28
        $region27: #{tpu_custom_call.1} parent=15 // pred_region
          %s209 = sand.u32 %s18, 1
          %s210 = scalar_lea.sflag [#allocation8], %s209
          %s211 = sand.u32 %s105, 1
          %s212 = smul.addr %s211, 8
          %s213 = scalar_lea.vmem [#allocation9], %s212
          %s215 = ssub.s32 128, 128
          %216 = vsyncadd %s210, %s215
          %s217 = sadd.s32 %s27, %s25
          %s218 = smul.addr %s217, 128
          %s219 = scalar_lea.hbm %s2, %s218
          %s221 = sshll.u32 %s213, 4
          %s222 = int_to_ptr.vmem [resolvable:$true] %s221
          %224 = dma.hbm_to_vmem [thread:$0]  %s219, 128, %s222, %s210
        $region28: #{tpu_custom_call.1} parent=15 // pred_fallthru
          _
      $region16: #{tpu_custom_call.1} parent=5 // pred_fallthru
        _
      %p225 = scmp.le.s32.totalorder 1, %s18
      %p226 = scmp.lt.s32.totalorder %s18, 3
      %p227 = pnand %p225, %p226
      %p228 = pneg %p227
      // Predicated region
      $region29: #{tpu_custom_call.1} parent=5 // pred_check
        _
      $region30: #{tpu_custom_call.1} parent=5 // pred_check_branch
        %230 = sbr.rel (%p227) target = $region32
      $region31: #{tpu_custom_call.1} parent=5 // pred_region
        %s231 = ssub.s32 %s18, 1
        %s232 = sand.u32 %s52, 1
        %s233 = scalar_lea.sflag [#allocation5], %s232
        %s234 = sand.u32 %s52, 1
        %s235 = smul.addr %s234, 8
        %s236 = scalar_lea.vmem [#allocation4], %s235
        // Predicated region
        $region33: #{tpu_custom_call.1} parent=31 // pred_check
          %p237 = pneg %p65
        $region34: #{tpu_custom_call.1} parent=31 // pred_check_branch
          %239 = sbr.rel (%p237) target = $region36
        $region35: #{tpu_custom_call.1} parent=31 // pred_region
          %240 = dma.done %s233, 128
        $region36: #{tpu_custom_call.1} parent=31 // pred_fallthru
          _
        %s241 = sand.u32 %s23, 1
        %s242 = scalar_lea.sflag [#allocation8], %s241
        %s243 = sand.u32 %s80, 1
        %s244 = smul.addr %s243, 8
        %s245 = scalar_lea.vmem [#allocation7], %s244
        // Predicated region
        $region37: #{tpu_custom_call.1} parent=31 // pred_check
          %p246 = pneg %p93
        $region38: #{tpu_custom_call.1} parent=31 // pred_check_branch
          %248 = sbr.rel (%p246) target = $region40
        $region39: #{tpu_custom_call.1} parent=31 // pred_region
          %249 = dma.done %s242, 128
        $region40: #{tpu_custom_call.1} parent=31 // pred_fallthru
          _
        %s250 = sand.u32 %s23, 1
        %s251 = scalar_lea.sflag [#allocation8], %s250
        %s252 = sand.u32 %s108, 1
        %s253 = smul.addr %s252, 8
        %s254 = scalar_lea.vmem [#allocation9], %s253
        // Predicated region
        $region41: #{tpu_custom_call.1} parent=31 // pred_check
          %p255 = pneg %p121
        $region42: #{tpu_custom_call.1} parent=31 // pred_check_branch
          %257 = sbr.rel (%p255) target = $region44
        $region43: #{tpu_custom_call.1} parent=31 // pred_region
          %258 = dma.done %s251, 128
        $region44: #{tpu_custom_call.1} parent=31 // pred_fallthru
          _
        %s259 = sand.u32 %s52, 1
        %s260 = scalar_lea.sflag [#allocation5], %s259
        %s261 = sand.u32 %s52, 1
        %s262 = smul.addr %s261, 8
        %s263 = scalar_lea.vmem [#allocation4], %s262
        %p264 = pneg %p65
        %p265 = pneg %p62
        %s266 = sand.u32 %s23, 1
        %s267 = scalar_lea.sflag [#allocation8], %s266
        %s268 = sand.u32 %s80, 1
        %s269 = smul.addr %s268, 8
        %s270 = scalar_lea.vmem [#allocation7], %s269
        %p271 = pneg %p93
        %p272 = pneg %p90
        %s273 = sand.u32 %s23, 1
        %s274 = scalar_lea.sflag [#allocation8], %s273
        %s275 = sand.u32 %s108, 1
        %s276 = smul.addr %s275, 8
        %s277 = scalar_lea.vmem [#allocation9], %s276
        %p278 = pneg %p121
        %p279 = pneg %p118
        %p280 = pneg %p149
        %p281 = pneg %p146
        %s282 = sand.u32 %s136, 1
        %s283 = scalar_lea.sflag [#allocation6], %s282
        %s284 = sand.u32 %s136, 1
        %s285 = smul.addr %s284, 8
        %s286 = scalar_lea.vmem [#allocation10], %s285
        %p287 = scmp.eq.s32.totalorder %s30, 0
        // Predicated region
        $region45: #{tpu_custom_call.1} parent=31 // pred_check
          %p288 = pneg %p287
        $region46: #{tpu_custom_call.1} parent=31 // pred_check_branch
          %290 = sbr.rel (%p288) target = $region48
        $region47: #{tpu_custom_call.1} parent=31 // pred_region
          %vm291 = vcmask 7168
          %292 = vst.msk [vmem:[#allocation2] sm:$0xff] %vm291, -inf
          %293 = vst.msk [vmem:[#allocation3] sm:$0xff] %vm291, 0.0
          %vm294 = vcmask 130048
          %295 = vst.msk [vmem:[%s286] sm:$0xff] %vm294, 0.0
        $region48: #{tpu_custom_call.1} parent=31 // pred_fallthru
          _
        %v296 = vld [vmem:[%s236] sm:$0xff]
        %v297 = vld [vmem:[%s245] sm:$0xff]
        %vm298 = vcmask 130048
        %v300 = vsel %vm298, %v296, 0
        %v303 = vsel %vm298, %v297, 0
        %305 = vmatprep.subr.mxu0 0.0
        %306 = vmatpush1.xpose.msra.mxu0 %v303
        %307 = vmatprep.subr.mxu0 0.0
        %308 = vmatpush1.xpose.msra.mxu0 0.0
        %309 = vmatprep.subr.mxu0 0.0
        %310 = vmatpush1.xpose.msra.mxu0 0.0
        %311 = vmatprep.subr.mxu0 0.0
        %312 = vmatpush1.xpose.msra.mxu0 0.0
        %313 = vmatprep.subr.mxu0 0.0
        %314 = vmatpush1.xpose.msra.mxu0 0.0
        %315 = vmatprep.subr.mxu0 0.0
        %316 = vmatpush1.xpose.msra.mxu0 0.0
        %317 = vmatprep.subr.mxu0 0.0
        %318 = vmatpush1.xpose.msra.mxu0 0.0
        %319 = vmatprep.subr.mxu0 0.0
        %320 = vmatpush1.xpose.msra.mxu0 0.0
        %321 = vmatprep.subr.mxu0 0.0
        %322 = vmatpush1.xpose.msra.mxu0 0.0
        %323 = vmatprep.subr.mxu0 0.0
        %324 = vmatpush1.xpose.msra.mxu0 0.0
        %325 = vmatprep.subr.mxu0 0.0
        %326 = vmatpush1.xpose.msra.mxu0 0.0
        %327 = vmatprep.subr.mxu0 0.0
        %328 = vmatpush1.xpose.msra.mxu0 0.0
        %329 = vmatprep.subr.mxu0 0.0
        %330 = vmatpush1.xpose.msra.mxu0 0.0
        %331 = vmatprep.subr.mxu0 0.0
        %332 = vmatpush1.xpose.msra.mxu0 0.0
        %333 = vmatprep.subr.mxu0 0.0
        %334 = vmatpush1.xpose.msra.mxu0 0.0
        %335 = vmatprep.subr.mxu0 0.0
        %336 = vmatpush1.xpose.msra.mxu0 0.0
        %337 = vmatprep.subr.mxu0 0.0
        %338 = vmatpush1.xpose.msra.mxu0 0.0
        %339 = vmatprep.subr.mxu0 0.0
        %340 = vmatpush1.xpose.msra.mxu0 0.0
        %341 = vmatprep.subr.mxu0 0.0
        %342 = vmatpush1.xpose.msra.mxu0 0.0
        %343 = vmatprep.subr.mxu0 0.0
        %344 = vmatpush1.xpose.msra.mxu0 0.0
        %345 = vmatprep.subr.mxu0 0.0
        %346 = vmatpush1.xpose.msra.mxu0 0.0
        %347 = vmatprep.subr.mxu0 0.0
        %348 = vmatpush1.xpose.msra.mxu0 0.0
        %349 = vmatprep.subr.mxu0 0.0
        %350 = vmatpush1.xpose.msra.mxu0 0.0
        %351 = vmatprep.subr.mxu0 0.0
        %352 = vmatpush1.xpose.msra.mxu0 0.0
        %353 = vmatprep.subr.mxu0 0.0
        %354 = vmatpush1.xpose.msra.mxu0 0.0
        %355 = vmatprep.subr.mxu0 0.0
        %356 = vmatpush1.xpose.msra.mxu0 0.0
        %357 = vmatprep.subr.mxu0 0.0
        %358 = vmatpush1.xpose.msra.mxu0 0.0
        %359 = vmatprep.subr.mxu0 0.0
        %360 = vmatpush1.xpose.msra.mxu0 0.0
        %361 = vmatprep.subr.mxu0 0.0
        %362 = vmatpush1.xpose.msra.mxu0 0.0
        %363 = vmatprep.subr.mxu0 0.0
        %364 = vmatpush1.xpose.msra.mxu0 0.0
        %365 = vmatprep.subr.mxu0 0.0
        %366 = vmatpush1.xpose.msra.mxu0 0.0
        %367 = vmatprep.subr.mxu0 0.0
        %368 = vmatpush1.xpose.msra.mxu0 0.0
        %369 = vmatprep.mubr.f32.mxu0 0.0
        %370 = vmatmul.mubr.f32.gmra.mrb[0].mxu0 %v300
        %v371 = vpop.f32.mrb[0].mxu0
        %v372 = vadd.f32 0.0, %v371
        %v373 = vpop.f32.mrb[0].mxu0
        %374 = vdwg.mxu0
        %s375 = smul.u32 %s29, 8
        %s376 = smul.u32 %s30, 8
        %s377 = sadd.s32 %s376, 8
        %p378 = scmp.lt.s32.totalorder %s375, %s377
        %s379 = sadd.s32 %s375, 8
        %p380 = scmp.lt.s32.totalorder %s376, %s379
        %p381 = pnand %p378, %p380
        %p382 = pneg %p381
        // Predicated region
        $region49: #{tpu_custom_call.1} parent=31 // pred_check
          _
        $region50: #{tpu_custom_call.1} parent=31 // pred_check_branch
          %384 = sbr.rel (%p381) target = $region52
        $region51: #{tpu_custom_call.1} parent=31 // pred_region
          %v385 = vlaneseq
          %v386 = vshrl.u32 %v385, 7
          %v387 = vstv %s375
          %v388 = vadd.s32 %v387, %v386
          %v389 = vlaneseq
          %v390 = vand.u32 %v389, 127
          %v391 = vstv %s376
          %v392 = vadd.s32 %v391, %v390
          %vm393 = vcmp.eq.s32.totalorder %v388, %v392
          %v394 = vsel %vm393, -3.4028235e+38, %v372
        $region52: #{tpu_custom_call.1} parent=31 // pred_fallthru
          %v395 = vphi 0, %v394
        // Predicated region
        $region53: #{tpu_custom_call.1} parent=31 // pred_check
          %p396 = pneg %p381
        $region54: #{tpu_custom_call.1} parent=31 // pred_check_branch
          %398 = sbr.rel (%p396) target = $region56
        $region55: #{tpu_custom_call.1} parent=31 // pred_region
          _
        $region56: #{tpu_custom_call.1} parent=31 // pred_fallthru
          %v399 = vphi %v395, %v372
        %v400 = vld [vmem:[#allocation2] sm:$0xff]
        %vm401 = vcmask 64512
        %v402 = vsel %vm401, %v399, -inf
        %403 = vmax.xlane.f32.xlu0 %v402
        %v404 = vpop.xlane.xlu0 %403
        %v405 = vmax.f32 %v400, %v404
        %v406 = vsub.f32 %v400, %v405
        %v407 = vmul.f32 %v406, 1.442695
        %v408 = vpow.pop %v407
        %410 = vset.pattern.permute.xlu0 0
        %411 = vperm.xlu0 %410, %v405
        %v412 = vpop.permute.xlu0 %411
        %v414 = vsub.f32 %v399, %v412
        %v415 = vmul.f32 %v414, 1.442695
        %v416 = vpow.pop %v415
        %v417 = vsel %vm401, %v416, 0.0
        %418 = vadd.xlane.f32.xlu0 %v417
        %v419 = vpop.xlane.xlu0 %418
        %v420 = vld [vmem:[#allocation3] sm:$0xff]
        %v421 = vmul.f32 %v408, %v420
        %v422 = vadd.f32 %v421, %v419
        %vm423 = vcmask 7168
        %424 = vst.msk [vmem:[#allocation3] sm:$0xff] %vm423, %v422
        %v425 = vld [vmem:[%s286] sm:$0xff]
        %427 = vset.pattern.permute.xlu0 0
        %428 = vperm.xlu0 %427, %v408
        %v429 = vpop.permute.xlu0 %428
        %v431 = vmul.f32 %v429, %v425
        %v432 = vld [vmem:[%s254] sm:$0xff]
        %v434 = vsel %vm401, %v416, 0
        %436 = vmatprep.subr.mxu0 0.0
        %437 = vmatpush1.msra.mxu0 %v432
        %438 = vmatprep.subr.mxu0 0.0
        %439 = vmatpush1.msra.mxu0 0.0
        %440 = vmatprep.subr.mxu0 0.0
        %441 = vmatpush1.msra.mxu0 0.0
        %442 = vmatprep.subr.mxu0 0.0
        %443 = vmatpush1.msra.mxu0 0.0
        %444 = vmatprep.subr.mxu0 0.0
        %445 = vmatpush1.msra.mxu0 0.0
        %446 = vmatprep.subr.mxu0 0.0
        %447 = vmatpush1.msra.mxu0 0.0
        %448 = vmatprep.subr.mxu0 0.0
        %449 = vmatpush1.msra.mxu0 0.0
        %450 = vmatprep.subr.mxu0 0.0
        %451 = vmatpush1.msra.mxu0 0.0
        %452 = vmatprep.subr.mxu0 0.0
        %453 = vmatpush1.msra.mxu0 0.0
        %454 = vmatprep.subr.mxu0 0.0
        %455 = vmatpush1.msra.mxu0 0.0
        %456 = vmatprep.subr.mxu0 0.0
        %457 = vmatpush1.msra.mxu0 0.0
        %458 = vmatprep.subr.mxu0 0.0
        %459 = vmatpush1.msra.mxu0 0.0
        %460 = vmatprep.subr.mxu0 0.0
        %461 = vmatpush1.msra.mxu0 0.0
        %462 = vmatprep.subr.mxu0 0.0
        %463 = vmatpush1.msra.mxu0 0.0
        %464 = vmatprep.subr.mxu0 0.0
        %465 = vmatpush1.msra.mxu0 0.0
        %466 = vmatprep.subr.mxu0 0.0
        %467 = vmatpush1.msra.mxu0 0.0
        %468 = vmatprep.subr.mxu0 0.0
        %469 = vmatpush1.msra.mxu0 0.0
        %470 = vmatprep.subr.mxu0 0.0
        %471 = vmatpush1.msra.mxu0 0.0
        %472 = vmatprep.subr.mxu0 0.0
        %473 = vmatpush1.msra.mxu0 0.0
        %474 = vmatprep.subr.mxu0 0.0
        %475 = vmatpush1.msra.mxu0 0.0
        %476 = vmatprep.subr.mxu0 0.0
        %477 = vmatpush1.msra.mxu0 0.0
        %478 = vmatprep.subr.mxu0 0.0
        %479 = vmatpush1.msra.mxu0 0.0
        %480 = vmatprep.subr.mxu0 0.0
        %481 = vmatpush1.msra.mxu0 0.0
        %482 = vmatprep.subr.mxu0 0.0
        %483 = vmatpush1.msra.mxu0 0.0
        %484 = vmatprep.subr.mxu0 0.0
        %485 = vmatpush1.msra.mxu0 0.0
        %486 = vmatprep.subr.mxu0 0.0
        %487 = vmatpush1.msra.mxu0 0.0
        %488 = vmatprep.subr.mxu0 0.0
        %489 = vmatpush1.msra.mxu0 0.0
        %490 = vmatprep.subr.mxu0 0.0
        %491 = vmatpush1.msra.mxu0 0.0
        %492 = vmatprep.subr.mxu0 0.0
        %493 = vmatpush1.msra.mxu0 0.0
        %494 = vmatprep.subr.mxu0 0.0
        %495 = vmatpush1.msra.mxu0 0.0
        %496 = vmatprep.subr.mxu0 0.0
        %497 = vmatpush1.msra.mxu0 0.0
        %498 = vmatprep.subr.mxu0 0.0
        %499 = vmatpush1.msra.mxu0 0.0
        %500 = vmatprep.mubr.f32.mxu0 0.0
        %501 = vmatmul.mubr.f32.gmra.mrb[0].mxu0 %v434
        %v502 = vpop.f32.mrb[0].mxu0
        %v503 = vadd.f32 0.0, %v502
        %v504 = vpop.f32.mrb[0].mxu0
        %505 = vdwg.mxu0
        %v506 = vadd.f32 %v431, %v503
        %507 = vst.msk [vmem:[%s286] sm:$0xff] %vm298, %v506
        %508 = vst.msk [vmem:[#allocation2] sm:$0xff] %vm423, %v405
        // Predicated region
        $region57: #{tpu_custom_call.1} parent=31 // pred_check
          %p509 = pneg %p287
        $region58: #{tpu_custom_call.1} parent=31 // pred_check_branch
          %511 = sbr.rel (%p509) target = $region60
        $region59: #{tpu_custom_call.1} parent=31 // pred_region
          %v512 = vld [vmem:[%s286] sm:$0xff]
          %v513 = vld [vmem:[#allocation3] sm:$0xff]
          %515 = vset.pattern.permute.xlu0 0
          %516 = vperm.xlu0 %515, %v513
          %v517 = vpop.permute.xlu0 %516
          %v519 = vrcp.pop %v517
          %v520 = vmul.f32 %v512, %v519
          %521 = vst.msk [vmem:[%s286] sm:$0xff] %vm298, %v520
        $region60: #{tpu_custom_call.1} parent=31 // pred_fallthru
          _
        %s522 = sand.u32 %s136, 1
        %s523 = scalar_lea.sflag [#allocation6], %s522
        %s524 = sand.u32 %s136, 1
        %s525 = smul.addr %s524, 8
        %s526 = scalar_lea.vmem [#allocation10], %s525
        // Predicated region
        $region61: #{tpu_custom_call.1} parent=31 // pred_check
          %p527 = pneg %p146
        $region62: #{tpu_custom_call.1} parent=31 // pred_check_branch
          %529 = sbr.rel (%p527) target = $region64
        $region63: #{tpu_custom_call.1} parent=31 // pred_region
          %s531 = ssub.s32 128, 128
          %532 = vsyncadd %s523, %s531
          %s533 = sadd.s32 %s29, %s28
          %s534 = smul.addr %s533, 128
          %s535 = scalar_lea.hbm %s3, %s534
          %s537 = sshll.u32 %s526, 4
          %s538 = int_to_ptr.vmem [resolvable:$true] %s537
          %540 = dma.vmem_to_hbm [thread:$0]  %s538, 128, %s535, %s523
        $region64: #{tpu_custom_call.1} parent=31 // pred_fallthru
          _
      $region32: #{tpu_custom_call.1} parent=5 // pred_fallthru
        _
      %p541 = scmp.le.s32.totalorder 2, %s18
      // Predicated region
      $region65: #{tpu_custom_call.1} parent=5 // pred_check
        %p542 = pneg %p541
      $region66: #{tpu_custom_call.1} parent=5 // pred_check_branch
        %544 = sbr.rel (%p542) target = $region68
      $region67: #{tpu_custom_call.1} parent=5 // pred_region
        %s545 = ssub.s32 %s18, 2
        // Predicated region
        $region69: #{tpu_custom_call.1} parent=67 // pred_check
          %p546 = pneg %p152
        $region70: #{tpu_custom_call.1} parent=67 // pred_check_branch
          %548 = sbr.rel (%p546) target = $region72
        $region71: #{tpu_custom_call.1} parent=67 // pred_region
          %s549 = sand.u32 %s137, 1
          %s550 = scalar_lea.sflag [#allocation6], %s549
          %s551 = sand.u32 %s137, 1
          %s552 = smul.addr %s551, 8
          %s553 = scalar_lea.vmem [#allocation10], %s552
          %554 = dma.done %s550, 128
        $region72: #{tpu_custom_call.1} parent=67 // pred_fallthru
          _
      $region68: #{tpu_custom_call.1} parent=5 // pred_fallthru
        _
    $region6: #{tpu_custom_call.1} parent=1 // loop_footer
      %s22 = sadd.s32 1, %s18
    $region7: #{tpu_custom_call.1} parent=1 // loop_footer_branch
      %17 = sbr.rel target = $region3
    $region8: #{tpu_custom_call.1} parent=1 // loop_exit
      _
    %555 = vsyncpa [#allocation5], 1
    %s556 = scalar_lea.sflag [#allocation5], 1
    %557 = vsyncpa %s556, 1
    %558 = vsyncpa [#allocation8], 1
    %s559 = scalar_lea.sflag [#allocation8], 1
    %560 = vsyncpa %s559, 1
    %561 = vsyncpa [#allocation6], 1
    %s562 = scalar_lea.sflag [#allocation6], 1
    %563 = vsyncpa %s562, 1

</llo_original>
